<compile_context>
chip_gen: v5e
topology: v5e:2x2
jax: 0.10.0
libtpu: 0.0.40
codegen_flags: <defaults>
</compile_context>

<pallas_src>
import jax
import jax.numpy as jnp
from jax.experimental import pallas as pl
from jax.experimental.pallas import tpu as pltpu

EPS = 1e-5          # nn.BatchNorm1d default eps
NEG_SLOPE = 0.01    # nn.LeakyReLU default negative_slope
LANE = 128          # TPU lane width


def _round_up(x, m):
    return (x + m - 1) // m * m


def make_kernel(n_hidden):
    """Kernel over one batch tile: refs = (x, [w,b]*n_hidden, w_out, b_out, o)."""

    def kernel(*refs):
        x_ref = refs[0]
        o_ref = refs[-1]

        h = x_ref[...]                                    # bf16 [TB, F_pad]
        idx = 1
        for _ in range(n_hidden):
            w_ref, b_ref = refs[idx], refs[idx + 1]
            idx += 2
            # Linear with BN pre-folded into (w, b); f32 accumulation.
            h = jnp.dot(h, w_ref[...], preferred_element_type=jnp.float32) + b_ref[...]
            # LeakyReLU in f32, then back to bf16 for the next MXU pass.
            h = jnp.where(h >= 0.0, h, NEG_SLOPE * h).astype(jnp.bfloat16)
            # Dropout is identity in eval mode.

        w_ref, b_ref = refs[idx], refs[idx + 1]
        logits = jnp.dot(h, w_ref[...], preferred_element_type=jnp.float32) + b_ref[...]
        o_ref[...] = jax.nn.sigmoid(logits)               # lane-dense [TB, 128] store

    return kernel


def build_raw_params(key, num_features, hidden_dim):
    """Torch-equivalent parameters (f32, unfolded, unpadded)."""
    dims = [num_features] + list(hidden_dim) + [1]
    layers = []
    keys = jax.random.split(key, 2 * (len(dims) - 1))
    for idx in range(len(dims) - 1):
        fan_in, fan_out = dims[idx], dims[idx + 1]
        std = (2.0 / (fan_in + fan_out)) ** 0.5                       # xavier_normal_
        w = std * jax.random.normal(keys[2 * idx], (fan_out, fan_in), jnp.float32)
        bound = 1.0 / (fan_in ** 0.5)                                  # torch Linear bias init
        b = jax.random.uniform(keys[2 * idx + 1], (fan_out,),
                               minval=-bound, maxval=bound, dtype=jnp.float32)
        layer = {"w": w, "b": b}
        if idx + 2 != len(dims):                                       # hidden layers get BN
            layer.update(gamma=jnp.ones((fan_out,), jnp.float32),
                         beta=jnp.zeros((fan_out,), jnp.float32),
                         mean=jnp.zeros((fan_out,), jnp.float32),
                         var=jnp.ones((fan_out,), jnp.float32))
        layers.append(layer)
    return layers


def fold_and_pack(layers):
    """Fold eval-mode BN into Linear, transpose to (in,out), pad to 128 lanes, bf16 weights."""
    packed = []
    for layer in layers:
        w, b = layer["w"], layer["b"]                     # (out, in), (out,)
        if "gamma" in layer:
            scale = layer["gamma"] * jax.lax.rsqrt(layer["var"] + EPS)
            w = w * scale[:, None]
            b = (b - layer["mean"]) * scale + layer["beta"]
        out_dim, in_dim = w.shape
        in_pad = _round_up(in_dim, LANE)
        out_pad = _round_up(out_dim, LANE)
        wt = jnp.zeros((in_pad, out_pad), jnp.float32).at[:in_dim, :out_dim].set(w.T)
        bp = jnp.zeros((1, out_pad), jnp.float32).at[0, :out_dim].set(b)
        packed.append(wt.astype(jnp.bfloat16))            # matmul input in bf16
        packed.append(bp)                                 # bias stays f32 (added post-accum)
    return packed


def mlp_forward(x, packed_params, *, tile_b=256):
    batch, feat = x.shape
    feat_pad = _round_up(feat, LANE)
    n_hidden = len(packed_params) // 2 - 1
    out_pad = packed_params[-1].shape[1]                  # 128 (padded output lanes)

    # Batch tile: multiple of 8 sublanes; stream large batches in tile_b rows.
    tb = tile_b if batch >= tile_b else _round_up(max(batch, 8), 8)
    b_pad = _round_up(batch, tb)

    x_pad = jnp.zeros((b_pad, feat_pad), jnp.bfloat16).at[:batch, :feat].set(
        x.astype(jnp.bfloat16))

    in_specs = [pl.BlockSpec((tb, feat_pad), lambda i: (i, 0))]        # streamed x tiles
    for p in packed_params:
        in_specs.append(pl.BlockSpec(p.shape, lambda i: (0, 0)))       # resident weights
    out_spec = pl.BlockSpec((tb, out_pad), lambda i: (i, 0))           # lane-dense output slab

    flops = 0
    for li in range(n_hidden + 1):
        w = packed_params[2 * li]
        flops += 2 * b_pad * w.shape[0] * w.shape[1]
    bytes_accessed = (x_pad.size * 2 + b_pad * out_pad * 4
                      + sum(int(p.size) * p.dtype.itemsize for p in packed_params))
    cost = pl.CostEstimate(flops=flops,
                           transcendentals=b_pad * out_pad,
                           bytes_accessed=bytes_accessed)

    out = pl.pallas_call(
        make_kernel(n_hidden),
        out_shape=jax.ShapeDtypeStruct((b_pad, out_pad), jnp.float32),
        grid=(b_pad // tb,),
        in_specs=in_specs,
        out_specs=out_spec,
        compiler_params=pltpu.CompilerParams(
            dimension_semantics=("parallel",)),            # lets v7x shard batch over 2 TCs
        cost_estimate=cost,
    )(x_pad, *packed_params)

    return out[:batch, :1]                                 # real logit column / real rows


def reference_forward(x, layers):
    """Pure-JAX f32 reference with un-folded BN (eval-mode torch semantics)."""
    h = x
    for layer in layers[:-1]:
        h = h @ layer["w"].T + layer["b"]
        h = (h - layer["mean"]) / jnp.sqrt(layer["var"] + EPS) * layer["gamma"] + layer["beta"]
        h = jnp.where(h >= 0.0, h, NEG_SLOPE * h)
    last = layers[-1]
    return jax.nn.sigmoid(h @ last["w"].T + last["b"])


if __name__ == "__main__":
    key = jax.random.PRNGKey(0)
    k_x, k_p = jax.random.split(key)

    num_features = 16          # len(feature_names)
    hidden_dim = [32, 32]
    batch = 8

    x = jax.random.normal(k_x, (batch, num_features), dtype=jnp.float32)
    layers = build_raw_params(k_p, num_features, hidden_dim)
    packed = fold_and_pack(layers)

    out = mlp_forward(x, packed)
    jax.block_until_ready(out)

    ref = reference_forward(x, layers)
    assert out.shape == (batch, 1)
    # bf16 matmul inputs in the kernel vs f32 reference -> widened tolerance.
    assert jnp.allclose(out, ref, atol=3e-2, rtol=3e-2), float(jnp.max(jnp.abs(out - ref)))

    print("KERNEL_OK")
</pallas_src>

<mosaic_0001>
module attributes {stable_mosaic.version = 11 : i64} {
  func.func @kernel(%arg0: i32, %arg1: memref<8x128xbf16, #tpu.memory_space<vmem>>, %arg2: memref<128x128xbf16, #tpu.memory_space<vmem>>, %arg3: memref<1x128xf32, #tpu.memory_space<vmem>>, %arg4: memref<128x128xbf16, #tpu.memory_space<vmem>>, %arg5: memref<1x128xf32, #tpu.memory_space<vmem>>, %arg6: memref<128x128xbf16, #tpu.memory_space<vmem>>, %arg7: memref<1x128xf32, #tpu.memory_space<vmem>>, %arg8: memref<8x128xf32, #tpu.memory_space<vmem>>) attributes {dimension_semantics = [#tpu.dimension_semantics<parallel>], iteration_bounds = array<i64: 1>, scalar_prefetch = 0 : i64, scratch_operands = 0 : i64, tpu.core_type = #tpu.core_type<tc>, window_params = [{transform_indices = @transform_0, window_bounds = array<i64: 8, 128>}, {pipeline_mode = #tpu.pipeline_mode<synchronous>, transform_indices = @transform_1, window_bounds = array<i64: 128, 128>}, {pipeline_mode = #tpu.pipeline_mode<synchronous>, transform_indices = @transform_2, window_bounds = array<i64: 1, 128>}, {pipeline_mode = #tpu.pipeline_mode<synchronous>, transform_indices = @transform_3, window_bounds = array<i64: 128, 128>}, {pipeline_mode = #tpu.pipeline_mode<synchronous>, transform_indices = @transform_4, window_bounds = array<i64: 1, 128>}, {pipeline_mode = #tpu.pipeline_mode<synchronous>, transform_indices = @transform_5, window_bounds = array<i64: 128, 128>}, {pipeline_mode = #tpu.pipeline_mode<synchronous>, transform_indices = @transform_6, window_bounds = array<i64: 1, 128>}, {transform_indices = @transform_7, window_bounds = array<i64: 8, 128>}]} {
    %c0 = arith.constant 0 : index
    %c0_0 = arith.constant 0 : index
    %0 = vector.load %arg1[%c0, %c0_0] : memref<8x128xbf16, #tpu.memory_space<vmem>>, vector<8x128xbf16>
    %c0_1 = arith.constant 0 : index
    %c0_2 = arith.constant 0 : index
    %1 = vector.load %arg2[%c0_1, %c0_2] : memref<128x128xbf16, #tpu.memory_space<vmem>>, vector<128x128xbf16>
    %cst = arith.constant dense<0.000000e+00> : vector<8x128xf32>
    %2 = tpu.matmul %0, %1, %cst {dimension_numbers = #tpu.dot_dimension_numbers<[1], [0], [0], [1], [0, 0, 1, 1], [], []>} : vector<8x128xbf16>, vector<128x128xbf16>, vector<8x128xf32> -> vector<8x128xf32>
    %c0_3 = arith.constant 0 : index
    %c0_4 = arith.constant 0 : index
    %3 = vector.load %arg3[%c0_3, %c0_4] : memref<1x128xf32, #tpu.memory_space<vmem>>, vector<1x128xf32>
    %4 = vector.broadcast %3 : vector<1x128xf32> to vector<8x128xf32>
    %5 = arith.addf %2, %4 : vector<8x128xf32>
    %cst_5 = arith.constant 0.000000e+00 : f32
    %6 = vector.broadcast %cst_5 : f32 to vector<8x128xf32>
    %7 = arith.cmpf oge, %5, %6 : vector<8x128xf32>
    %cst_6 = arith.constant 0.00999999977 : f32
    %8 = vector.broadcast %cst_6 : f32 to vector<8x128xf32>
    %9 = arith.mulf %8, %5 : vector<8x128xf32>
    %10 = arith.select %7, %5, %9 : vector<8x128xi1>, vector<8x128xf32>
    %11 = arith.truncf %10 : vector<8x128xf32> to vector<8x128xbf16>
    %c0_7 = arith.constant 0 : index
    %c0_8 = arith.constant 0 : index
    %12 = vector.load %arg4[%c0_7, %c0_8] : memref<128x128xbf16, #tpu.memory_space<vmem>>, vector<128x128xbf16>
    %cst_9 = arith.constant dense<0.000000e+00> : vector<8x128xf32>
    %13 = tpu.matmul %11, %12, %cst_9 {dimension_numbers = #tpu.dot_dimension_numbers<[1], [0], [0], [1], [0, 0, 1, 1], [], []>} : vector<8x128xbf16>, vector<128x128xbf16>, vector<8x128xf32> -> vector<8x128xf32>
    %c0_10 = arith.constant 0 : index
    %c0_11 = arith.constant 0 : index
    %14 = vector.load %arg5[%c0_10, %c0_11] : memref<1x128xf32, #tpu.memory_space<vmem>>, vector<1x128xf32>
    %15 = vector.broadcast %14 : vector<1x128xf32> to vector<8x128xf32>
    %16 = arith.addf %13, %15 : vector<8x128xf32>
    %cst_12 = arith.constant 0.000000e+00 : f32
    %17 = vector.broadcast %cst_12 : f32 to vector<8x128xf32>
    %18 = arith.cmpf oge, %16, %17 : vector<8x128xf32>
    %cst_13 = arith.constant 0.00999999977 : f32
    %19 = vector.broadcast %cst_13 : f32 to vector<8x128xf32>
    %20 = arith.mulf %19, %16 : vector<8x128xf32>
    %21 = arith.select %18, %16, %20 : vector<8x128xi1>, vector<8x128xf32>
    %22 = arith.truncf %21 : vector<8x128xf32> to vector<8x128xbf16>
    %c0_14 = arith.constant 0 : index
    %c0_15 = arith.constant 0 : index
    %23 = vector.load %arg6[%c0_14, %c0_15] : memref<128x128xbf16, #tpu.memory_space<vmem>>, vector<128x128xbf16>
    %cst_16 = arith.constant dense<0.000000e+00> : vector<8x128xf32>
    %24 = tpu.matmul %22, %23, %cst_16 {dimension_numbers = #tpu.dot_dimension_numbers<[1], [0], [0], [1], [0, 0, 1, 1], [], []>} : vector<8x128xbf16>, vector<128x128xbf16>, vector<8x128xf32> -> vector<8x128xf32>
    %c0_17 = arith.constant 0 : index
    %c0_18 = arith.constant 0 : index
    %25 = vector.load %arg7[%c0_17, %c0_18] : memref<1x128xf32, #tpu.memory_space<vmem>>, vector<1x128xf32>
    %26 = vector.broadcast %25 : vector<1x128xf32> to vector<8x128xf32>
    %27 = arith.addf %24, %26 : vector<8x128xf32>
    %28 = arith.negf %27 : vector<8x128xf32>
    %29 = math.exp %28 : vector<8x128xf32>
    %cst_19 = arith.constant 1.000000e+00 : f32
    %30 = vector.broadcast %cst_19 : f32 to vector<8x128xf32>
    %31 = arith.addf %30, %29 : vector<8x128xf32>
    %32 = arith.divf %30, %31 : vector<8x128xf32>
    %c0_20 = arith.constant 0 : index
    %c0_21 = arith.constant 0 : index
    %33 = vector.load %arg8[%c0_20, %c0_21] : memref<8x128xf32, #tpu.memory_space<vmem>>, vector<8x128xf32>
    tpu.vector_store %arg8[%c0_20, %c0_21], %32 {strides = array<i32>} : memref<8x128xf32, #tpu.memory_space<vmem>>, vector<8x128xf32>,
    return
  }
  func.func @transform_0(%arg0: i32) -> (i32, i32) {
    %c0_i32 = arith.constant 0 : i32
    %c0_i32_0 = arith.constant 0 : i32
    return %arg0, %c0_i32 : i32, i32
  }
  func.func @transform_1(%arg0: i32) -> (i32, i32) {
    %c0_i32 = arith.constant 0 : i32
    %c0_i32_0 = arith.constant 0 : i32
    %c0_i32_1 = arith.constant 0 : i32
    return %c0_i32, %c0_i32_0 : i32, i32
  }
  func.func @transform_2(%arg0: i32) -> (i32, i32) {
    %c0_i32 = arith.constant 0 : i32
    %c0_i32_0 = arith.constant 0 : i32
    %c0_i32_1 = arith.constant 0 : i32
    return %c0_i32, %c0_i32_0 : i32, i32
  }
  func.func @transform_3(%arg0: i32) -> (i32, i32) {
    %c0_i32 = arith.constant 0 : i32
    %c0_i32_0 = arith.constant 0 : i32
    %c0_i32_1 = arith.constant 0 : i32
    return %c0_i32, %c0_i32_0 : i32, i32
  }
  func.func @transform_4(%arg0: i32) -> (i32, i32) {
    %c0_i32 = arith.constant 0 : i32
    %c0_i32_0 = arith.constant 0 : i32
    %c0_i32_1 = arith.constant 0 : i32
    return %c0_i32, %c0_i32_0 : i32, i32
  }
  func.func @transform_5(%arg0: i32) -> (i32, i32) {
    %c0_i32 = arith.constant 0 : i32
    %c0_i32_0 = arith.constant 0 : i32
    %c0_i32_1 = arith.constant 0 : i32
    return %c0_i32, %c0_i32_0 : i32, i32
  }
  func.func @transform_6(%arg0: i32) -> (i32, i32) {
    %c0_i32 = arith.constant 0 : i32
    %c0_i32_0 = arith.constant 0 : i32
    %c0_i32_1 = arith.constant 0 : i32
    return %c0_i32, %c0_i32_0 : i32, i32
  }
  func.func @transform_7(%arg0: i32) -> (i32, i32) {
    %c0_i32 = arith.constant 0 : i32
    %c0_i32_0 = arith.constant 0 : i32
    return %arg0, %c0_i32 : i32, i32
  }
}

</mosaic_0001>

<llo_original>
// kernel: tpu_custom_call.1
$region0: #{tpu_custom_call.1}
  #allocation0 [shape = 'u32[]', space=smem, size = 0x4, offset = 0x4, fixed_abs, tag = 'smem constant byte address 0x4 - core index']
  #allocation1 [shape = 'u32[72,128]{1,0:T(1,128)}', space=vmem, size = 0x9000, scoped, tag = 'internal scratch']
  %s0 = inlined_call_operand.hbm [shape: bf16[8,128], index: 0, kind: input, shape index: {}]
  %s1 = inlined_call_operand.hbm [shape: bf16[128,128], index: 1, kind: input, shape index: {}]
  %s2 = inlined_call_operand.vmem [shape: f32[1,128], index: 2, kind: input, shape index: {}]
  %s3 = inlined_call_operand.hbm [shape: bf16[128,128], index: 3, kind: input, shape index: {}]
  %s4 = inlined_call_operand.vmem [shape: f32[1,128], index: 4, kind: input, shape index: {}]
  %s5 = inlined_call_operand.hbm [shape: bf16[128,128], index: 5, kind: input, shape index: {}]
  %s6 = inlined_call_operand.vmem [shape: f32[1,128], index: 6, kind: input, shape index: {}]
  %s7 = inlined_call_operand.hbm [shape: f32[8,128], index: 7, kind: output, shape index: {}]
  %s8 = sld [smem:[#allocation0]]
  $region54: #{tpu_custom_call.1} parent=0
    _
  %s10 = ssub.s32 1, %s8
  %s11 = scalar_select 0, %s10, %s8
  $region1: #{tpu_custom_call.1} parent=0
    #allocation2 [shape = 'u8[2048]{0}', space=vmem, size = 0x800, scoped, tag = 'input window, operand 0, single buffered']
    #allocation3 [shape = 's32[1]{0}', space=sflag, size = 0x4, scoped, tag = 'scoped memory for tpu_custom_call.1']
    #allocation4 [shape = 's32[1]{0}', space=sflag, size = 0x4, scoped, tag = 'scoped memory for tpu_custom_call.1']
    #allocation5 [shape = 'u8[32768]{0}', space=vmem, size = 0x8000, scoped, tag = 'input window, operand 1, single buffered']
    #allocation6 [shape = 's32[1]{0}', space=sflag, size = 0x4, scoped, tag = 'scoped memory for tpu_custom_call.1']
    #allocation7 [shape = 'u8[32768]{0}', space=vmem, size = 0x8000, scoped, tag = 'input window, operand 3, single buffered']
    #allocation8 [shape = 'u8[32768]{0}', space=vmem, size = 0x8000, scoped, tag = 'input window, operand 5, single buffered']
    #allocation9 [shape = 's32[1]{0}', space=sflag, size = 0x4, scoped, tag = 'scoped memory for tpu_custom_call.1']
    #allocation10 [shape = 'u8[4096]{0}', space=vmem, size = 0x1000, scoped, tag = 'output window, operand 0, single buffered']
    %12 = vsyncpa [#allocation3], 0
    %13 = vsyncpa [#allocation6], 0
    %14 = vsyncpa [#allocation9], 0
    %15 = vsyncpa [#allocation4], 0
    // Predicated region
    $region2: #{tpu_custom_call.1} parent=1 // pred_check
      _
    $region3: #{tpu_custom_call.1} parent=1 // pred_check_branch
      %17 = sbr.rel (0) target = $region5
    $region4: #{tpu_custom_call.1} parent=1 // pred_region
      %19 = vsyncadd [#allocation3], 0
      %s21 = sshll.u32 %s0, 4
      %s22 = int_to_ptr.hbm [resolvable:$true] %s21
      %s23 = sshll.u32 [#allocation2], 4
      %s24 = int_to_ptr.vmem [resolvable:$true] %s23
      %26 = dma.hbm_to_vmem [thread:$0]  %s22, 64, %s24, [#allocation3]
    $region5: #{tpu_custom_call.1} parent=1 // pred_fallthru
      _
    // Predicated region
    $region6: #{tpu_custom_call.1} parent=1 // pred_check
      _
    $region7: #{tpu_custom_call.1} parent=1 // pred_check_branch
      %28 = sbr.rel (0) target = $region9
    $region8: #{tpu_custom_call.1} parent=1 // pred_region
      %30 = vsyncadd [#allocation6], 0
      %s31 = sshll.u32 %s1, 4
      %s32 = int_to_ptr.hbm [resolvable:$true] %s31
      %s33 = sshll.u32 [#allocation5], 4
      %s34 = int_to_ptr.vmem [resolvable:$true] %s33
      %39 = dma.hbm_to_vmem [thread:$0]  %s32, 1024, %s34, [#allocation6], 64, 64, 4
    $region9: #{tpu_custom_call.1} parent=1 // pred_fallthru
      _
    // Predicated region
    $region10: #{tpu_custom_call.1} parent=1 // pred_check
      _
    $region11: #{tpu_custom_call.1} parent=1 // pred_check_branch
      %41 = sbr.rel (0) target = $region13
    $region12: #{tpu_custom_call.1} parent=1 // pred_region
      _
    $region13: #{tpu_custom_call.1} parent=1 // pred_fallthru
      _
    // Predicated region
    $region14: #{tpu_custom_call.1} parent=1 // pred_check
      _
    $region15: #{tpu_custom_call.1} parent=1 // pred_check_branch
      %43 = sbr.rel (0) target = $region17
    $region16: #{tpu_custom_call.1} parent=1 // pred_region
      %45 = vsyncadd [#allocation6], 0
      %s46 = sshll.u32 %s3, 4
      %s47 = int_to_ptr.hbm [resolvable:$true] %s46
      %s48 = sshll.u32 [#allocation7], 4
      %s49 = int_to_ptr.vmem [resolvable:$true] %s48
      %54 = dma.hbm_to_vmem [thread:$0]  %s47, 1024, %s49, [#allocation6], 64, 64, 4
    $region17: #{tpu_custom_call.1} parent=1 // pred_fallthru
      _
    // Predicated region
    $region18: #{tpu_custom_call.1} parent=1 // pred_check
      _
    $region19: #{tpu_custom_call.1} parent=1 // pred_check_branch
      %56 = sbr.rel (0) target = $region21
    $region20: #{tpu_custom_call.1} parent=1 // pred_region
      _
    $region21: #{tpu_custom_call.1} parent=1 // pred_fallthru
      _
    // Predicated region
    $region22: #{tpu_custom_call.1} parent=1 // pred_check
      _
    $region23: #{tpu_custom_call.1} parent=1 // pred_check_branch
      %58 = sbr.rel (0) target = $region25
    $region24: #{tpu_custom_call.1} parent=1 // pred_region
      %60 = vsyncadd [#allocation9], 0
      %s61 = sshll.u32 %s5, 4
      %s62 = int_to_ptr.hbm [resolvable:$true] %s61
      %s63 = sshll.u32 [#allocation8], 4
      %s64 = int_to_ptr.vmem [resolvable:$true] %s63
      %69 = dma.hbm_to_vmem [thread:$0]  %s62, 1024, %s64, [#allocation9], 64, 64, 4
    $region25: #{tpu_custom_call.1} parent=1 // pred_fallthru
      _
    // Predicated region
    $region26: #{tpu_custom_call.1} parent=1 // pred_check
      _
    $region27: #{tpu_custom_call.1} parent=1 // pred_check_branch
      %71 = sbr.rel (0) target = $region29
    $region28: #{tpu_custom_call.1} parent=1 // pred_region
      _
    $region29: #{tpu_custom_call.1} parent=1 // pred_fallthru
      _
    // Predicated region
    $region30: #{tpu_custom_call.1} parent=1 // pred_check
      _
    $region31: #{tpu_custom_call.1} parent=1 // pred_check_branch
      %73 = sbr.rel (0) target = $region33
    $region32: #{tpu_custom_call.1} parent=1 // pred_region
      %75 = dma.done [#allocation3], 64
    $region33: #{tpu_custom_call.1} parent=1 // pred_fallthru
      _
    // Predicated region
    $region34: #{tpu_custom_call.1} parent=1 // pred_check
      _
    $region35: #{tpu_custom_call.1} parent=1 // pred_check_branch
      %77 = sbr.rel (0) target = $region37
    $region36: #{tpu_custom_call.1} parent=1 // pred_region
      %79 = dma.done [#allocation6], 1024
    $region37: #{tpu_custom_call.1} parent=1 // pred_fallthru
      _
    // Predicated region
    $region38: #{tpu_custom_call.1} parent=1 // pred_check
      _
    $region39: #{tpu_custom_call.1} parent=1 // pred_check_branch
      %81 = sbr.rel (0) target = $region41
    $region40: #{tpu_custom_call.1} parent=1 // pred_region
      %83 = dma.done [#allocation6], 1024
    $region41: #{tpu_custom_call.1} parent=1 // pred_fallthru
      _
    // Predicated region
    $region42: #{tpu_custom_call.1} parent=1 // pred_check
      _
    $region43: #{tpu_custom_call.1} parent=1 // pred_check_branch
      %85 = sbr.rel (0) target = $region45
    $region44: #{tpu_custom_call.1} parent=1 // pred_region
      %87 = dma.done [#allocation9], 1024
    $region45: #{tpu_custom_call.1} parent=1 // pred_fallthru
      _
    %v88 = vld [vmem:[#allocation2] sm:$0xf]
    %v89 = vld [vmem:[#allocation5] sm:$0xf]
    %v90 = vld [vmem:[#allocation5 + $0x4] sm:$0xf]
    %v91 = vld [vmem:[#allocation5 + $0x8] sm:$0xf]
    %v92 = vld [vmem:[#allocation5 + $0xc] sm:$0xf]
    %v93 = vld [vmem:[#allocation5 + $0x10] sm:$0xf]
    %v94 = vld [vmem:[#allocation5 + $0x14] sm:$0xf]
    %v95 = vld [vmem:[#allocation5 + $0x18] sm:$0xf]
    %v96 = vld [vmem:[#allocation5 + $0x1c] sm:$0xf]
    %v97 = vld [vmem:[#allocation5 + $0x20] sm:$0xf]
    %v98 = vld [vmem:[#allocation5 + $0x24] sm:$0xf]
    %v99 = vld [vmem:[#allocation5 + $0x28] sm:$0xf]
    %v100 = vld [vmem:[#allocation5 + $0x2c] sm:$0xf]
    %v101 = vld [vmem:[#allocation5 + $0x30] sm:$0xf]
    %v102 = vld [vmem:[#allocation5 + $0x34] sm:$0xf]
    %v103 = vld [vmem:[#allocation5 + $0x38] sm:$0xf]
    %v104 = vld [vmem:[#allocation5 + $0x3c] sm:$0xf]
    %v105 = vld [vmem:[%s2] sm:$0x1]
    %v107 = vperm.slane %v105, 0
    %v125 = vunpack.c.l.b16 %v89
    %v126 = vunpack.c.l.b16 %v90
    %v127 = vunpack.c.l.b16 %v91
    %v128 = vunpack.c.l.b16 %v92
    %v129 = vunpack.c.l.b16 %v93
    %v130 = vunpack.c.l.b16 %v94
    %v131 = vunpack.c.l.b16 %v95
    %v132 = vunpack.c.l.b16 %v96
    %v133 = vunpack.c.l.b16 %v97
    %v134 = vunpack.c.l.b16 %v98
    %v135 = vunpack.c.l.b16 %v99
    %v136 = vunpack.c.l.b16 %v100
    %v137 = vunpack.c.l.b16 %v101
    %v138 = vunpack.c.l.b16 %v102
    %v139 = vunpack.c.l.b16 %v103
    %v140 = vunpack.c.l.b16 %v104
    %v141 = vpack.c.b16 %v126, %v125
    %v142 = vpack.c.b16 %v128, %v127
    %v143 = vpack.c.b16 %v130, %v129
    %v144 = vpack.c.b16 %v132, %v131
    %v145 = vpack.c.b16 %v134, %v133
    %v146 = vpack.c.b16 %v136, %v135
    %v147 = vpack.c.b16 %v138, %v137
    %v148 = vpack.c.b16 %v140, %v139
    %157 = vmatpush.bf16.msra.mxu0 %v148
    %158 = vmatpush.bf16.msra.mxu0 %v147
    %159 = vmatpush.bf16.msra.mxu0 %v146
    %160 = vmatpush.bf16.msra.mxu0 %v145
    %161 = vmatpush.bf16.msra.mxu0 %v144
    %162 = vmatpush.bf16.msra.mxu0 %v143
    %163 = vmatpush.bf16.msra.mxu0 %v142
    %164 = vmatpush.bf16.msra.mxu0 %v141
    %165 = vmatmul.bf16.gmra.mxu0 %v88
    %v166 = vpop.f32.mrf.mxu0
    %v167 = vadd.f32 %v107, %v166
    %v168 = vpop.f32.mrf.mxu0
    %169 = vdwg.mxu0
    %vm170 = vcmp.ge.f32.partialorder %v167, 0.0
    %v171 = vmul.f32 %v167, 0.01
    %v172 = vsel %vm170, %v167, %v171
    %v173 = vpack.c.bf16 %v172, %v172
    %v174 = vld [vmem:[#allocation7] sm:$0xf]
    %v175 = vld [vmem:[#allocation7 + $0x4] sm:$0xf]
    %v176 = vld [vmem:[#allocation7 + $0x8] sm:$0xf]
    %v177 = vld [vmem:[#allocation7 + $0xc] sm:$0xf]
    %v178 = vld [vmem:[#allocation7 + $0x10] sm:$0xf]
    %v179 = vld [vmem:[#allocation7 + $0x14] sm:$0xf]
    %v180 = vld [vmem:[#allocation7 + $0x18] sm:$0xf]
    %v181 = vld [vmem:[#allocation7 + $0x1c] sm:$0xf]
    %v182 = vld [vmem:[#allocation7 + $0x20] sm:$0xf]
    %v183 = vld [vmem:[#allocation7 + $0x24] sm:$0xf]
    %v184 = vld [vmem:[#allocation7 + $0x28] sm:$0xf]
    %v185 = vld [vmem:[#allocation7 + $0x2c] sm:$0xf]
    %v186 = vld [vmem:[#allocation7 + $0x30] sm:$0xf]
    %v187 = vld [vmem:[#allocation7 + $0x34] sm:$0xf]
    %v188 = vld [vmem:[#allocation7 + $0x38] sm:$0xf]
    %v189 = vld [vmem:[#allocation7 + $0x3c] sm:$0xf]
    %v190 = vld [vmem:[%s4] sm:$0x1]
    %v192 = vperm.slane %v190, 0
    %v210 = vunpack.c.l.b16 %v174
    %v211 = vunpack.c.l.b16 %v175
    %v212 = vunpack.c.l.b16 %v176
    %v213 = vunpack.c.l.b16 %v177
    %v214 = vunpack.c.l.b16 %v178
    %v215 = vunpack.c.l.b16 %v179
    %v216 = vunpack.c.l.b16 %v180
    %v217 = vunpack.c.l.b16 %v181
    %v218 = vunpack.c.l.b16 %v182
    %v219 = vunpack.c.l.b16 %v183
    %v220 = vunpack.c.l.b16 %v184
    %v221 = vunpack.c.l.b16 %v185
    %v222 = vunpack.c.l.b16 %v186
    %v223 = vunpack.c.l.b16 %v187
    %v224 = vunpack.c.l.b16 %v188
    %v225 = vunpack.c.l.b16 %v189
    %v226 = vpack.c.b16 %v211, %v210
    %v227 = vpack.c.b16 %v213, %v212
    %v228 = vpack.c.b16 %v215, %v214
    %v229 = vpack.c.b16 %v217, %v216
    %v230 = vpack.c.b16 %v219, %v218
    %v231 = vpack.c.b16 %v221, %v220
    %v232 = vpack.c.b16 %v223, %v222
    %v233 = vpack.c.b16 %v225, %v224
    %242 = vmatpush.bf16.msra.mxu0 %v233
    %243 = vmatpush.bf16.msra.mxu0 %v232
    %244 = vmatpush.bf16.msra.mxu0 %v231
    %245 = vmatpush.bf16.msra.mxu0 %v230
    %246 = vmatpush.bf16.msra.mxu0 %v229
    %247 = vmatpush.bf16.msra.mxu0 %v228
    %248 = vmatpush.bf16.msra.mxu0 %v227
    %249 = vmatpush.bf16.msra.mxu0 %v226
    %250 = vmatmul.bf16.gmra.mxu0 %v173
    %v251 = vpop.f32.mrf.mxu0
    %v252 = vadd.f32 %v192, %v251
    %v253 = vpop.f32.mrf.mxu0
    %254 = vdwg.mxu0
    %vm255 = vcmp.ge.f32.partialorder %v252, 0.0
    %v256 = vmul.f32 %v252, 0.01
    %v257 = vsel %vm255, %v252, %v256
    %v258 = vpack.c.bf16 %v257, %v257
    %v259 = vld [vmem:[#allocation8] sm:$0xf]
    %v260 = vld [vmem:[#allocation8 + $0x4] sm:$0xf]
    %v261 = vld [vmem:[#allocation8 + $0x8] sm:$0xf]
    %v262 = vld [vmem:[#allocation8 + $0xc] sm:$0xf]
    %v263 = vld [vmem:[#allocation8 + $0x10] sm:$0xf]
    %v264 = vld [vmem:[#allocation8 + $0x14] sm:$0xf]
    %v265 = vld [vmem:[#allocation8 + $0x18] sm:$0xf]
    %v266 = vld [vmem:[#allocation8 + $0x1c] sm:$0xf]
    %v267 = vld [vmem:[#allocation8 + $0x20] sm:$0xf]
    %v268 = vld [vmem:[#allocation8 + $0x24] sm:$0xf]
    %v269 = vld [vmem:[#allocation8 + $0x28] sm:$0xf]
    %v270 = vld [vmem:[#allocation8 + $0x2c] sm:$0xf]
    %v271 = vld [vmem:[#allocation8 + $0x30] sm:$0xf]
    %v272 = vld [vmem:[#allocation8 + $0x34] sm:$0xf]
    %v273 = vld [vmem:[#allocation8 + $0x38] sm:$0xf]
    %v274 = vld [vmem:[#allocation8 + $0x3c] sm:$0xf]
    %v275 = vld [vmem:[%s6] sm:$0x1]
    %v277 = vperm.slane %v275, 0
    %v295 = vunpack.c.l.b16 %v259
    %v296 = vunpack.c.l.b16 %v260
    %v297 = vunpack.c.l.b16 %v261
    %v298 = vunpack.c.l.b16 %v262
    %v299 = vunpack.c.l.b16 %v263
    %v300 = vunpack.c.l.b16 %v264
    %v301 = vunpack.c.l.b16 %v265
    %v302 = vunpack.c.l.b16 %v266
    %v303 = vunpack.c.l.b16 %v267
    %v304 = vunpack.c.l.b16 %v268
    %v305 = vunpack.c.l.b16 %v269
    %v306 = vunpack.c.l.b16 %v270
    %v307 = vunpack.c.l.b16 %v271
    %v308 = vunpack.c.l.b16 %v272
    %v309 = vunpack.c.l.b16 %v273
    %v310 = vunpack.c.l.b16 %v274
    %v311 = vpack.c.b16 %v296, %v295
    %v312 = vpack.c.b16 %v298, %v297
    %v313 = vpack.c.b16 %v300, %v299
    %v314 = vpack.c.b16 %v302, %v301
    %v315 = vpack.c.b16 %v304, %v303
    %v316 = vpack.c.b16 %v306, %v305
    %v317 = vpack.c.b16 %v308, %v307
    %v318 = vpack.c.b16 %v310, %v309
    %327 = vmatpush.bf16.msra.mxu0 %v318
    %328 = vmatpush.bf16.msra.mxu0 %v317
    %329 = vmatpush.bf16.msra.mxu0 %v316
    %330 = vmatpush.bf16.msra.mxu0 %v315
    %331 = vmatpush.bf16.msra.mxu0 %v314
    %332 = vmatpush.bf16.msra.mxu0 %v313
    %333 = vmatpush.bf16.msra.mxu0 %v312
    %334 = vmatpush.bf16.msra.mxu0 %v311
    %335 = vmatmul.bf16.gmra.mxu0 %v258
    %v336 = vpop.f32.mrf.mxu0
    %v337 = vadd.f32 %v277, %v336
    %v338 = vpop.f32.mrf.mxu0
    %339 = vdwg.mxu0
    %v340 = vxor.u32 %v337, 2147483648
    %v341 = vmul.f32 %v340, 1.442695
    %v342 = vpow.pop %v341
    %v343 = vadd.f32 %v342, 1.0
    %v344 = vrcp.pop %v343
    %v345 = vmul.f32 %v343, %v344
    %v346 = vsub.f32 1.0, %v345
    %v347 = vmul.f32 %v344, %v346
    %v348 = vadd.f32 %v344, %v347
    %vm349 = vweird.f32 %v343
    %vm350 = vweird.f32 %v344
    %vm351 = vmor %vm349, %vm350
    %v352 = vsel %vm351, %v344, %v348
    %v353 = vand.u32 2147483647, %v343
    %vm354 = vcmp.eq.f32.partialorder %v353, 8.507059e+37
    %v355 = vand.u32 %v343, 2147483648
    %v356 = vor.u32 1.1754944e-38, %v355
    %v357 = vsel %vm354, %v356, %v352
    %v358 = vmul.f32 1.0, %v357
    %359 = vst [vmem:[#allocation10] sm:$0xff] %v358
    // Predicated region
    $region46: #{tpu_custom_call.1} parent=1 // pred_check
      _
    $region47: #{tpu_custom_call.1} parent=1 // pred_check_branch
      %361 = sbr.rel (0) target = $region49
    $region48: #{tpu_custom_call.1} parent=1 // pred_region
      %363 = vsyncadd [#allocation4], 0
      %s365 = sshll.u32 [#allocation10], 4
      %s366 = int_to_ptr.vmem [resolvable:$true] %s365
      %s367 = sshll.u32 %s7, 4
      %s368 = int_to_ptr.hbm [resolvable:$true] %s367
      %370 = dma.vmem_to_hbm [thread:$0]  %s366, 128, %s368, [#allocation4]
    $region49: #{tpu_custom_call.1} parent=1 // pred_fallthru
      _
    // Predicated region
    $region50: #{tpu_custom_call.1} parent=1 // pred_check
      _
    $region51: #{tpu_custom_call.1} parent=1 // pred_check_branch
      %372 = sbr.rel (0) target = $region53
    $region52: #{tpu_custom_call.1} parent=1 // pred_region
      %374 = dma.done [#allocation4], 128
    $region53: #{tpu_custom_call.1} parent=1 // pred_fallthru
      _
    %375 = vsyncpa [#allocation3], 1
    %376 = vsyncpa [#allocation6], 1
    %377 = vsyncpa [#allocation9], 1
    %378 = vsyncpa [#allocation4], 1

</llo_original>
